<compile_context>
chip_gen: v6e
topology: v6e:2x2x1
jax: 0.10.0
libtpu: 0.0.40
codegen_flags: <defaults>
</compile_context>

<pallas_src>
import functools

import jax
import jax.numpy as jnp
import numpy as np
from jax.experimental import pallas as pl
from jax.experimental.pallas import tpu as pltpu

HIGHEST = jax.lax.Precision.HIGHEST


# ----------------------------- Pallas kernel ------------------------------ #

def bnn_attn3_kernel(xf_ref, wbig_ref, bd_ref, gamma_ref, beta_ref,
                     wom_ref, uom_ref, fmask_ref, fcw_ref, fcb_ref,
                     out_ref, *, n_time):
    L2 = n_time
    eps = 1e-11

    # --- fused encoder + conv_transpose: ONE lane-packed GEMM --------------
    dec = jnp.dot(xf_ref[...], wbig_ref[...],
                  preferred_element_type=jnp.float32) + bd_ref[...]      # (L2, B*32)

    # --- LayerNorm over time (torch: unbiased std, eps added to std) -------
    # Time-axis reductions as ones-row MXU contractions (MXU has slack).
    ones_t = jnp.ones((1, L2), jnp.float32)
    mean = jnp.dot(ones_t, dec, preferred_element_type=jnp.float32) * (1.0 / L2)
    centered = dec - mean
    ssq = jnp.dot(ones_t, centered * centered,
                  preferred_element_type=jnp.float32)                    # (1, B*32)
    std = jnp.sqrt(ssq * (1.0 / (L2 - 1)))
    xn = centered / (std + eps)
    xn = gamma_ref[...] * xn + beta_ref[...]                             # (L2, B*32)

    # --- attention over time, all batches at once (block-diag weights) -----
    u = jnp.tanh(jnp.dot(xn, wom_ref[...], preferred_element_type=jnp.float32))
    att = jnp.dot(u, uom_ref[...], preferred_element_type=jnp.float32)   # (L2, B)
    att = att - jnp.max(att, axis=0, keepdims=True)
    e = jnp.exp(att)
    denom = jnp.dot(ones_t, e, preferred_element_type=jnp.float32)       # (1, B)
    score = e * pl.reciprocal(denom, approx=True)                        # (L2, B)

    # Attention pooling as an MXU contraction over time (TN dot); off-diagonal
    # batch blocks are zeroed so the tiled fc weight sees only its own batch.
    feats_full = jax.lax.dot_general(score, xn, (((0,), (0,)), ((), ())),
                                     preferred_element_type=jnp.float32)  # (B, B*32)
    feats = feats_full * fmask_ref[...]

    # Bayesian linear + class softmax (lane-padded logits; padded-class bias
    # is -1e30 so exp underflows to exactly 0).  Exact division for the final
    # probabilities.
    logits = jnp.dot(feats, fcw_ref[...],
                     preferred_element_type=jnp.float32) + fcb_ref[...]   # (B, n_pad)
    logits = logits - jnp.max(logits, axis=-1, keepdims=True)
    e2 = jnp.exp(logits)
    out_ref[...] = e2 / jnp.sum(e2, axis=-1, keepdims=True)


# ------------------------------ wrapper ------------------------------------ #

def bnn_attention3_forward(x, raw, n_out):
    """x: (B, T, C_in) f32 padded batch-first sequence. Returns (B, n_out) softmax."""
    B, T, C = x.shape
    assert T >= 3, "need T >= 3 for the k=3 valid conv"
    L1, L2 = T - 2, T + 2
    KE, KD, CO = 3, 5, 32
    F = KD * KE * C + KD                                    # per-batch fused feature width
    n_pad = ((n_out + 127) // 128) * 128

    We, be = raw["enc_W"], raw["enc_b"]                     # (32, C, 3), (32,)
    Wd, bd = raw["dec_W"], raw["dec_b"]                     # (32, 32, 5), (32,)
    Wf, bf = raw["fc_W"], raw["fc_b"]                       # (n_out, 32), (n_out,)
    gamma, beta = raw["gamma"], raw["beta"]
    w_omega, u_omega = raw["w_omega"], raw["u_omega"]

    # ---- weight fusion / block-diagonal packing (wrapper-side plumbing) ----
    # W_ed[(k*3+m)*C + c, o] = sum_i Wd[i,o,k] * We[i,c,m]
    # W_ed[15C + k, o]       = sum_i Wd[i,o,k] * be[i]      (encoder bias through tap k)
    WdWe = jnp.einsum("iok,icm->kmco", Wd, We, precision=HIGHEST)      # (5,3,C,32)
    b_part = jnp.einsum("iok,i->ko", Wd, be, precision=HIGHEST)        # (5,32)
    W_ed = jnp.concatenate([WdWe.reshape(KD * KE * C, CO), b_part], axis=0)  # (F,32)

    eye = jnp.eye(B, dtype=jnp.float32)
    W_big = jnp.einsum("ab,fo->afbo", eye, W_ed).reshape(B * F, B * CO)
    wom_blk = jnp.einsum("ab,ip->aibp", eye, w_omega).reshape(B * CO, B * CO)
    uom_blk = jnp.einsum("ab,i->aib", eye, u_omega[:, 0]).reshape(B * CO, B)
    feat_mask = jnp.einsum("ab,o->abo", eye,
                           jnp.ones((CO,), jnp.float32)).reshape(B, B * CO)
    bd_t = jnp.tile(bd, B).reshape(1, B * CO)
    gamma_t = jnp.tile(gamma, B).reshape(1, B * CO)
    beta_t = jnp.tile(beta, B).reshape(1, B * CO)
    fcw_pad = jnp.zeros((CO, n_pad), jnp.float32).at[:, :n_out].set(Wf.T)
    fcw_tiled = jnp.tile(fcw_pad, (B, 1))                               # (B*32, n_pad)
    fcb_pad = jnp.full((1, n_pad), -1e30, jnp.float32).at[0, :n_out].set(bf)

    # ---- composite im2col at decoder-output positions (lane-packed LHS) ----
    j = jnp.arange(L2)
    k = jnp.arange(KD)
    m = jnp.arange(KE)
    jk = j[:, None] - k[None, :]
    valid = ((jk >= 0) & (jk <= L1 - 1)).astype(jnp.float32)            # (L2, 5)
    idx = jnp.clip(jk[:, :, None] + m[None, None, :], 0, T - 1)         # (L2, 5, 3)
    xg = x[:, idx, :] * valid[None, :, :, None, None]                   # (B, L2, 5, 3, C)
    feat = jnp.concatenate(
        [xg.reshape(B, L2, KD * KE * C),
         jnp.broadcast_to(valid[None], (B, L2, KD))], axis=-1)          # (B, L2, F)
    x_feat = jnp.transpose(feat, (1, 0, 2)).reshape(L2, B * F).astype(jnp.float32)

    kern = functools.partial(bnn_attn3_kernel, n_time=L2)

    grid_spec = pltpu.PrefetchScalarGridSpec(
        num_scalar_prefetch=0,
        grid=(1,),                                  # whole (small) batch, one step
        in_specs=[
            pl.BlockSpec((L2, B * F), lambda i: (0, 0)),        # fused im2col LHS
            pl.BlockSpec((B * F, B * CO), lambda i: (0, 0)),    # fused enc+dec W (block-diag)
            pl.BlockSpec((1, B * CO), lambda i: (0, 0)),        # decoder bias (lane-tiled)
            pl.BlockSpec((1, B * CO), lambda i: (0, 0)),        # LN gamma (lane-tiled)
            pl.BlockSpec((1, B * CO), lambda i: (0, 0)),        # LN beta (lane-tiled)
            pl.BlockSpec((B * CO, B * CO), lambda i: (0, 0)),   # w_omega (block-diag)
            pl.BlockSpec((B * CO, B), lambda i: (0, 0)),        # u_omega (block-diag)
            pl.BlockSpec((B, B * CO), lambda i: (0, 0)),        # batch-diagonal feat mask
            pl.BlockSpec((B * CO, n_pad), lambda i: (0, 0)),    # fc weight (tiled, padded)
            pl.BlockSpec((1, n_pad), lambda i: (0, 0)),         # fc bias (padded, -inf tail)
        ],
        out_specs=pl.BlockSpec((B, n_pad), lambda i: (0, 0)),
    )

    out_padded = pl.pallas_call(
        kern,
        out_shape=jax.ShapeDtypeStruct((B, n_pad), jnp.float32),
        grid_spec=grid_spec,
        compiler_params=pltpu.CompilerParams(dimension_semantics=("arbitrary",)),
    )(x_feat, W_big, bd_t, gamma_t, beta_t, wom_blk, uom_blk, feat_mask,
      fcw_tiled, fcb_pad)

    return out_padded[:, :n_out]


# --------------------------- parameter setup (glue) ------------------------ #

def softplus(x):
    return jnp.log1p(jnp.exp(x))


def kl_div(prior_mu, prior_sigma, mu_q, sigma_q):
    return 0.5 * jnp.sum(
        2.0 * jnp.log(prior_sigma / sigma_q) - 1.0
        + (sigma_q / prior_sigma) ** 2
        + ((prior_mu - mu_q) / prior_sigma) ** 2
    )


def sample_bayes(key, shape, *, mu_init=(0.0, 0.1), rho_init=(-3.0, 0.1)):
    k_mu, k_rho, k_eps = jax.random.split(key, 3)
    mu = mu_init[0] + mu_init[1] * jax.random.normal(k_mu, shape, jnp.float32)
    rho = rho_init[0] + rho_init[1] * jax.random.normal(k_rho, shape, jnp.float32)
    sigma = softplus(rho)
    eps = jax.random.normal(k_eps, shape, jnp.float32)
    return mu + eps * sigma, mu, sigma


def build_params(key, *, inputs, outputs):
    ks = jax.random.split(key, 8)
    prior_mu, prior_sigma = 0.0, 0.1

    w_e, w_e_mu, w_e_sig = sample_bayes(ks[0], (32, inputs, 3))   # BBBConv1d
    b_e, b_e_mu, b_e_sig = sample_bayes(ks[1], (32,))
    w_d, w_d_mu, w_d_sig = sample_bayes(ks[2], (32, 32, 5))       # BBBTransConv1d
    b_d, b_d_mu, b_d_sig = sample_bayes(ks[3], (32,))
    w_f, w_f_mu, w_f_sig = sample_bayes(ks[4], (outputs, 32))     # BBBLinear
    b_f, b_f_mu, b_f_sig = sample_bayes(ks[5], (outputs,))
    w_omega = jax.random.normal(ks[6], (32, 32), jnp.float32) / 50.0
    u_omega = jax.random.normal(ks[7], (32, 1), jnp.float32) / 50.0
    gamma = jnp.ones((32,), jnp.float32)
    beta = jnp.zeros((32,), jnp.float32)

    kl = (kl_div(prior_mu, prior_sigma, w_e_mu, w_e_sig)
          + kl_div(prior_mu, prior_sigma, b_e_mu, b_e_sig)
          + kl_div(prior_mu, prior_sigma, w_d_mu, w_d_sig)
          + kl_div(prior_mu, prior_sigma, b_d_mu, b_d_sig)
          + kl_div(prior_mu, prior_sigma, w_f_mu, w_f_sig)
          + kl_div(prior_mu, prior_sigma, b_f_mu, b_f_sig))

    raw = {
        "enc_W": w_e, "enc_b": b_e,
        "dec_W": w_d, "dec_b": b_d,
        "fc_W": w_f, "fc_b": b_f,
        "w_omega": w_omega, "u_omega": u_omega,
        "gamma": gamma, "beta": beta,
    }
    return raw, kl


# ------------------------------ reference (JAX) ---------------------------- #

def reference_forward(x, raw):
    B, T, C = x.shape
    L1, L2 = T - 2, T + 2
    W1, b1 = raw["enc_W"], raw["enc_b"]          # (32, C, 3), (32,)
    Wd, bd = raw["dec_W"], raw["dec_b"]          # (32, 32, 5), (32,)

    # Conv1d (valid): y[b, l, o] = b1[o] + sum_{c,k} x[b, l+k, c] W1[o, c, k]
    y = sum(jnp.einsum("blc,oc->blo", x[:, k:k + L1, :], W1[:, :, k],
                       precision=HIGHEST) for k in range(3)) + b1            # (B, L1, 32)

    # ConvTranspose1d (k=5, stride 1)
    dec = jnp.zeros((B, L2, 32), jnp.float32)
    for k in range(5):
        dec = dec.at[:, k:k + L1, :].add(
            jnp.einsum("bli,io->blo", y, Wd[:, :, k], precision=HIGHEST))
    dec = dec + bd

    # LayerNorm over dim=1 (time), torch-style (unbiased std, eps added to std)
    mean = jnp.mean(dec, axis=1, keepdims=True)
    std = jnp.std(dec, axis=1, keepdims=True, ddof=1)
    x3 = (dec - mean) / (std + 1e-11)
    x3 = raw["gamma"] * x3 + raw["beta"]

    u = jnp.tanh(jnp.matmul(x3, raw["w_omega"], precision=HIGHEST))
    att = jnp.matmul(u, raw["u_omega"], precision=HIGHEST)                   # (B, L2, 1)
    score = jax.nn.softmax(att, axis=1)
    feat = jnp.sum(x3 * score, axis=1)                                       # (B, 32)
    logits = jnp.matmul(feat, raw["fc_W"].T, precision=HIGHEST) + raw["fc_b"]
    return jax.nn.softmax(logits, axis=1)


# ----------------------------------- main ---------------------------------- #

if __name__ == "__main__":
    B, T, C_in, n_out = 2, 16, 4, 5

    root = jax.random.PRNGKey(0)
    k_x, k_params = jax.random.split(root)

    x = jax.random.normal(k_x, (B, T, C_in), jnp.float32)   # padded batch-first sequence
    raw, kl = build_params(k_params, inputs=C_in, outputs=n_out)

    out = bnn_attention3_forward(x, raw, n_out)
    out = jax.block_until_ready(out)
    kl = jax.block_until_ready(kl)

    ref = jax.block_until_ready(reference_forward(x, raw))
    np.testing.assert_allclose(np.asarray(out), np.asarray(ref), rtol=1e-2, atol=1e-3)
    assert out.shape == (B, n_out)
    assert np.isfinite(float(kl))

    print("KERNEL_OK")
</pallas_src>

<mosaic_0001>
module attributes {stable_mosaic.version = 11 : i64} {
  func.func @bnn_attn3_kernel(%arg0: i32, %arg1: memref<18x130xf32, #tpu.memory_space<vmem>>, %arg2: memref<130x64xf32, #tpu.memory_space<vmem>>, %arg3: memref<1x64xf32, #tpu.memory_space<vmem>>, %arg4: memref<1x64xf32, #tpu.memory_space<vmem>>, %arg5: memref<1x64xf32, #tpu.memory_space<vmem>>, %arg6: memref<64x64xf32, #tpu.memory_space<vmem>>, %arg7: memref<64x2xf32, #tpu.memory_space<vmem>>, %arg8: memref<2x64xf32, #tpu.memory_space<vmem>>, %arg9: memref<64x128xf32, #tpu.memory_space<vmem>>, %arg10: memref<1x128xf32, #tpu.memory_space<vmem>>, %arg11: memref<2x128xf32, #tpu.memory_space<vmem>>) attributes {dimension_semantics = [#tpu.dimension_semantics<arbitrary>], iteration_bounds = array<i64: 1>, scalar_prefetch = 0 : i64, scratch_operands = 0 : i64, tpu.core_type = #tpu.core_type<tc>, window_params = [{pipeline_mode = #tpu.pipeline_mode<synchronous>, transform_indices = @transform_0, window_bounds = array<i64: 18, 130>}, {pipeline_mode = #tpu.pipeline_mode<synchronous>, transform_indices = @transform_1, window_bounds = array<i64: 130, 64>}, {pipeline_mode = #tpu.pipeline_mode<synchronous>, transform_indices = @transform_2, window_bounds = array<i64: 1, 64>}, {pipeline_mode = #tpu.pipeline_mode<synchronous>, transform_indices = @transform_3, window_bounds = array<i64: 1, 64>}, {pipeline_mode = #tpu.pipeline_mode<synchronous>, transform_indices = @transform_4, window_bounds = array<i64: 1, 64>}, {pipeline_mode = #tpu.pipeline_mode<synchronous>, transform_indices = @transform_5, window_bounds = array<i64: 64, 64>}, {pipeline_mode = #tpu.pipeline_mode<synchronous>, transform_indices = @transform_6, window_bounds = array<i64: 64, 2>}, {pipeline_mode = #tpu.pipeline_mode<synchronous>, transform_indices = @transform_7, window_bounds = array<i64: 2, 64>}, {pipeline_mode = #tpu.pipeline_mode<synchronous>, transform_indices = @transform_8, window_bounds = array<i64: 64, 128>}, {pipeline_mode = #tpu.pipeline_mode<synchronous>, transform_indices = @transform_9, window_bounds = array<i64: 1, 128>}, {pipeline_mode = #tpu.pipeline_mode<synchronous>, transform_indices = @transform_10, window_bounds = array<i64: 2, 128>}]} {
    %c0 = arith.constant 0 : index
    %c0_0 = arith.constant 0 : index
    %0 = vector.load %arg1[%c0, %c0_0] : memref<18x130xf32, #tpu.memory_space<vmem>>, vector<18x130xf32>
    %c0_1 = arith.constant 0 : index
    %c0_2 = arith.constant 0 : index
    %1 = vector.load %arg2[%c0_1, %c0_2] : memref<130x64xf32, #tpu.memory_space<vmem>>, vector<130x64xf32>
    %cst = arith.constant dense<0.000000e+00> : vector<18x64xf32>
    %2 = tpu.matmul %0, %1, %cst {dimension_numbers = #tpu.dot_dimension_numbers<[1], [0], [0], [1], [0, 0, 1, 1], [], []>} : vector<18x130xf32>, vector<130x64xf32>, vector<18x64xf32> -> vector<18x64xf32>
    %c0_3 = arith.constant 0 : index
    %c0_4 = arith.constant 0 : index
    %3 = vector.load %arg3[%c0_3, %c0_4] : memref<1x64xf32, #tpu.memory_space<vmem>>, vector<1x64xf32>
    %4 = vector.broadcast %3 : vector<1x64xf32> to vector<18x64xf32>
    %5 = arith.addf %2, %4 : vector<18x64xf32>
    %cst_5 = arith.constant 1.000000e+00 : f32
    %6 = vector.broadcast %cst_5 : f32 to vector<1x18xf32>
    %cst_6 = arith.constant dense<0.000000e+00> : vector<1x64xf32>
    %7 = tpu.matmul %6, %5, %cst_6 {dimension_numbers = #tpu.dot_dimension_numbers<[1], [0], [0], [1], [0, 0, 1, 1], [], []>} : vector<1x18xf32>, vector<18x64xf32>, vector<1x64xf32> -> vector<1x64xf32>
    %cst_7 = arith.constant 0.055555556 : f32
    %8 = vector.broadcast %cst_7 : f32 to vector<1x64xf32>
    %9 = arith.mulf %7, %8 : vector<1x64xf32>
    %10 = vector.broadcast %9 : vector<1x64xf32> to vector<18x64xf32>
    %11 = arith.subf %5, %10 : vector<18x64xf32>
    %12 = arith.mulf %11, %11 : vector<18x64xf32>
    %cst_8 = arith.constant dense<0.000000e+00> : vector<1x64xf32>
    %13 = tpu.matmul %6, %12, %cst_8 {dimension_numbers = #tpu.dot_dimension_numbers<[1], [0], [0], [1], [0, 0, 1, 1], [], []>} : vector<1x18xf32>, vector<18x64xf32>, vector<1x64xf32> -> vector<1x64xf32>
    %cst_9 = arith.constant 0.0588235296 : f32
    %14 = vector.broadcast %cst_9 : f32 to vector<1x64xf32>
    %15 = arith.mulf %13, %14 : vector<1x64xf32>
    %16 = math.sqrt %15 : vector<1x64xf32>
    %cst_10 = arith.constant 9.99999996E-12 : f32
    %17 = vector.broadcast %cst_10 : f32 to vector<1x64xf32>
    %18 = arith.addf %16, %17 : vector<1x64xf32>
    %19 = vector.broadcast %18 : vector<1x64xf32> to vector<18x64xf32>
    %20 = arith.divf %11, %19 : vector<18x64xf32>
    %c0_11 = arith.constant 0 : index
    %c0_12 = arith.constant 0 : index
    %21 = vector.load %arg4[%c0_11, %c0_12] : memref<1x64xf32, #tpu.memory_space<vmem>>, vector<1x64xf32>
    %22 = vector.broadcast %21 : vector<1x64xf32> to vector<18x64xf32>
    %23 = arith.mulf %22, %20 : vector<18x64xf32>
    %c0_13 = arith.constant 0 : index
    %c0_14 = arith.constant 0 : index
    %24 = vector.load %arg5[%c0_13, %c0_14] : memref<1x64xf32, #tpu.memory_space<vmem>>, vector<1x64xf32>
    %25 = vector.broadcast %24 : vector<1x64xf32> to vector<18x64xf32>
    %26 = arith.addf %23, %25 : vector<18x64xf32>
    %c0_15 = arith.constant 0 : index
    %c0_16 = arith.constant 0 : index
    %27 = vector.load %arg6[%c0_15, %c0_16] : memref<64x64xf32, #tpu.memory_space<vmem>>, vector<64x64xf32>
    %cst_17 = arith.constant dense<0.000000e+00> : vector<18x64xf32>
    %28 = tpu.matmul %26, %27, %cst_17 {dimension_numbers = #tpu.dot_dimension_numbers<[1], [0], [0], [1], [0, 0, 1, 1], [], []>} : vector<18x64xf32>, vector<64x64xf32>, vector<18x64xf32> -> vector<18x64xf32>
    %29 = math.tanh %28 : vector<18x64xf32>
    %c0_18 = arith.constant 0 : index
    %c0_19 = arith.constant 0 : index
    %30 = vector.load %arg7[%c0_18, %c0_19] : memref<64x2xf32, #tpu.memory_space<vmem>>, vector<64x2xf32>
    %cst_20 = arith.constant dense<0.000000e+00> : vector<18x2xf32>
    %31 = tpu.matmul %29, %30, %cst_20 {dimension_numbers = #tpu.dot_dimension_numbers<[1], [0], [0], [1], [0, 0, 1, 1], [], []>} : vector<18x64xf32>, vector<64x2xf32>, vector<18x2xf32> -> vector<18x2xf32>
    %cst_21 = arith.constant dense<0xFF800000> : vector<2xf32>
    %32 = vector.multi_reduction <maximumf>, %31, %cst_21 [0] : vector<18x2xf32> to vector<2xf32>
    %33 = vector.shape_cast %32 : vector<2xf32> to vector<1x2xf32>
    %34 = vector.broadcast %33 : vector<1x2xf32> to vector<18x2xf32>
    %35 = arith.subf %31, %34 : vector<18x2xf32>
    %36 = math.exp %35 : vector<18x2xf32>
    %cst_22 = arith.constant dense<0.000000e+00> : vector<1x2xf32>
    %37 = tpu.matmul %6, %36, %cst_22 {dimension_numbers = #tpu.dot_dimension_numbers<[1], [0], [0], [1], [0, 0, 1, 1], [], []>} : vector<1x18xf32>, vector<18x2xf32>, vector<1x2xf32> -> vector<1x2xf32>
    %38 = tpu.reciprocal %37 {approx = true} : vector<1x2xf32> -> vector<1x2xf32>
    %39 = vector.broadcast %38 : vector<1x2xf32> to vector<18x2xf32>
    %40 = arith.mulf %36, %39 : vector<18x2xf32>
    %cst_23 = arith.constant dense<0.000000e+00> : vector<2x64xf32>
    %41 = tpu.matmul %40, %26, %cst_23 {dimension_numbers = #tpu.dot_dimension_numbers<[0], [0], [1], [1], [0, 1, 1, 1], [], []>} : vector<18x2xf32>, vector<18x64xf32>, vector<2x64xf32> -> vector<2x64xf32>
    %c0_24 = arith.constant 0 : index
    %c0_25 = arith.constant 0 : index
    %42 = vector.load %arg8[%c0_24, %c0_25] : memref<2x64xf32, #tpu.memory_space<vmem>>, vector<2x64xf32>
    %43 = arith.mulf %41, %42 : vector<2x64xf32>
    %c0_26 = arith.constant 0 : index
    %c0_27 = arith.constant 0 : index
    %44 = vector.load %arg9[%c0_26, %c0_27] : memref<64x128xf32, #tpu.memory_space<vmem>>, vector<64x128xf32>
    %cst_28 = arith.constant dense<0.000000e+00> : vector<2x128xf32>
    %45 = tpu.matmul %43, %44, %cst_28 {dimension_numbers = #tpu.dot_dimension_numbers<[1], [0], [0], [1], [0, 0, 1, 1], [], []>} : vector<2x64xf32>, vector<64x128xf32>, vector<2x128xf32> -> vector<2x128xf32>
    %c0_29 = arith.constant 0 : index
    %c0_30 = arith.constant 0 : index
    %46 = vector.load %arg10[%c0_29, %c0_30] : memref<1x128xf32, #tpu.memory_space<vmem>>, vector<1x128xf32>
    %47 = vector.broadcast %46 : vector<1x128xf32> to vector<2x128xf32>
    %48 = arith.addf %45, %47 : vector<2x128xf32>
    %cst_31 = arith.constant dense<0xFF800000> : vector<2xf32>
    %49 = vector.multi_reduction <maximumf>, %48, %cst_31 [1] : vector<2x128xf32> to vector<2xf32>
    %50 = vector.shape_cast %49 : vector<2xf32> to vector<2x1xf32>
    %51 = vector.broadcast %50 : vector<2x1xf32> to vector<2x128xf32>
    %52 = arith.subf %48, %51 : vector<2x128xf32>
    %53 = math.exp %52 : vector<2x128xf32>
    %cst_32 = arith.constant dense<0.000000e+00> : vector<2xf32>
    %54 = vector.multi_reduction <add>, %53, %cst_32 [1] : vector<2x128xf32> to vector<2xf32>
    %55 = vector.shape_cast %54 : vector<2xf32> to vector<2x1xf32>
    %56 = vector.broadcast %55 : vector<2x1xf32> to vector<2x128xf32>
    %57 = arith.divf %53, %56 : vector<2x128xf32>
    %c0_33 = arith.constant 0 : index
    %c0_34 = arith.constant 0 : index
    %58 = vector.load %arg11[%c0_33, %c0_34] : memref<2x128xf32, #tpu.memory_space<vmem>>, vector<2x128xf32>
    tpu.vector_store %arg11[%c0_33, %c0_34], %57 {strides = array<i32>} : memref<2x128xf32, #tpu.memory_space<vmem>>, vector<2x128xf32>,
    return
  }
  func.func @transform_0(%arg0: i32) -> (i32, i32) {
    %c0_i32 = arith.constant 0 : i32
    %c0_i32_0 = arith.constant 0 : i32
    %c0_i32_1 = arith.constant 0 : i32
    return %c0_i32, %c0_i32_0 : i32, i32
  }
  func.func @transform_1(%arg0: i32) -> (i32, i32) {
    %c0_i32 = arith.constant 0 : i32
    %c0_i32_0 = arith.constant 0 : i32
    %c0_i32_1 = arith.constant 0 : i32
    return %c0_i32, %c0_i32_0 : i32, i32
  }
  func.func @transform_2(%arg0: i32) -> (i32, i32) {
    %c0_i32 = arith.constant 0 : i32
    %c0_i32_0 = arith.constant 0 : i32
    %c0_i32_1 = arith.constant 0 : i32
    return %c0_i32, %c0_i32_0 : i32, i32
  }
  func.func @transform_3(%arg0: i32) -> (i32, i32) {
    %c0_i32 = arith.constant 0 : i32
    %c0_i32_0 = arith.constant 0 : i32
    %c0_i32_1 = arith.constant 0 : i32
    return %c0_i32, %c0_i32_0 : i32, i32
  }
  func.func @transform_4(%arg0: i32) -> (i32, i32) {
    %c0_i32 = arith.constant 0 : i32
    %c0_i32_0 = arith.constant 0 : i32
    %c0_i32_1 = arith.constant 0 : i32
    return %c0_i32, %c0_i32_0 : i32, i32
  }
  func.func @transform_5(%arg0: i32) -> (i32, i32) {
    %c0_i32 = arith.constant 0 : i32
    %c0_i32_0 = arith.constant 0 : i32
    %c0_i32_1 = arith.constant 0 : i32
    return %c0_i32, %c0_i32_0 : i32, i32
  }
  func.func @transform_6(%arg0: i32) -> (i32, i32) {
    %c0_i32 = arith.constant 0 : i32
    %c0_i32_0 = arith.constant 0 : i32
    %c0_i32_1 = arith.constant 0 : i32
    return %c0_i32, %c0_i32_0 : i32, i32
  }
  func.func @transform_7(%arg0: i32) -> (i32, i32) {
    %c0_i32 = arith.constant 0 : i32
    %c0_i32_0 = arith.constant 0 : i32
    %c0_i32_1 = arith.constant 0 : i32
    return %c0_i32, %c0_i32_0 : i32, i32
  }
  func.func @transform_8(%arg0: i32) -> (i32, i32) {
    %c0_i32 = arith.constant 0 : i32
    %c0_i32_0 = arith.constant 0 : i32
    %c0_i32_1 = arith.constant 0 : i32
    return %c0_i32, %c0_i32_0 : i32, i32
  }
  func.func @transform_9(%arg0: i32) -> (i32, i32) {
    %c0_i32 = arith.constant 0 : i32
    %c0_i32_0 = arith.constant 0 : i32
    %c0_i32_1 = arith.constant 0 : i32
    return %c0_i32, %c0_i32_0 : i32, i32
  }
  func.func @transform_10(%arg0: i32) -> (i32, i32) {
    %c0_i32 = arith.constant 0 : i32
    %c0_i32_0 = arith.constant 0 : i32
    %c0_i32_1 = arith.constant 0 : i32
    return %c0_i32, %c0_i32_0 : i32, i32
  }
}

</mosaic_0001>

<llo_original>
// kernel: tpu_custom_call.1
$region0: #{tpu_custom_call.1}
  #allocation0 [shape = 'u32[]', space=smem, size = 0x4, offset = 0x4, fixed_abs, tag = 'smem constant byte address 0x4 - core index']
  #allocation1 [shape = 'u32[144,128]{1,0:T(1,128)}', space=vmem, size = 0x12000, scoped, tag = 'internal scratch']
  %s0 = inlined_call_operand.vmem [shape: f32[18,130], index: 0, kind: input, shape index: {}]
  %s1 = inlined_call_operand.vmem [shape: f32[130,64], index: 1, kind: input, shape index: {}]
  %s2 = inlined_call_operand.vmem [shape: f32[1,64], index: 2, kind: input, shape index: {}]
  %s3 = inlined_call_operand.vmem [shape: f32[1,64], index: 3, kind: input, shape index: {}]
  %s4 = inlined_call_operand.vmem [shape: f32[1,64], index: 4, kind: input, shape index: {}]
  %s5 = inlined_call_operand.vmem [shape: f32[64,64], index: 5, kind: input, shape index: {}]
  %s6 = inlined_call_operand.vmem [shape: f32[64,2], index: 6, kind: input, shape index: {}]
  %s7 = inlined_call_operand.vmem [shape: f32[2,64], index: 7, kind: input, shape index: {}]
  %s8 = inlined_call_operand.vmem [shape: f32[64,128], index: 8, kind: input, shape index: {}]
  %s9 = inlined_call_operand.vmem [shape: f32[1,128], index: 9, kind: input, shape index: {}]
  %s10 = inlined_call_operand.hbm [shape: f32[2,128], index: 10, kind: output, shape index: {}]
  %s11 = sld [smem:[#allocation0]]
  $region50: #{tpu_custom_call.1} parent=0
    _
  %s13 = ssub.s32 1, %s11
  %s14 = scalar_select 0, %s13, %s11
  $region1: #{tpu_custom_call.1} parent=0
    #allocation2 [shape = 'u8[1024]{0}', space=vmem, size = 0x400, scoped, tag = 'output window, operand 0, single buffered']
    #allocation3 [shape = 's32[1]{0}', space=sflag, size = 0x4, scoped, tag = 'scoped memory for tpu_custom_call.1']
    %15 = vsyncpa [#allocation3], 0
    // Predicated region
    $region2: #{tpu_custom_call.1} parent=1 // pred_check
      _
    $region3: #{tpu_custom_call.1} parent=1 // pred_check_branch
      %17 = sbr.rel (0) target = $region5
    $region4: #{tpu_custom_call.1} parent=1 // pred_region
      _
    $region5: #{tpu_custom_call.1} parent=1 // pred_fallthru
      _
    // Predicated region
    $region6: #{tpu_custom_call.1} parent=1 // pred_check
      _
    $region7: #{tpu_custom_call.1} parent=1 // pred_check_branch
      %19 = sbr.rel (0) target = $region9
    $region8: #{tpu_custom_call.1} parent=1 // pred_region
      _
    $region9: #{tpu_custom_call.1} parent=1 // pred_fallthru
      _
    // Predicated region
    $region10: #{tpu_custom_call.1} parent=1 // pred_check
      _
    $region11: #{tpu_custom_call.1} parent=1 // pred_check_branch
      %21 = sbr.rel (0) target = $region13
    $region12: #{tpu_custom_call.1} parent=1 // pred_region
      _
    $region13: #{tpu_custom_call.1} parent=1 // pred_fallthru
      _
    // Predicated region
    $region14: #{tpu_custom_call.1} parent=1 // pred_check
      _
    $region15: #{tpu_custom_call.1} parent=1 // pred_check_branch
      %23 = sbr.rel (0) target = $region17
    $region16: #{tpu_custom_call.1} parent=1 // pred_region
      _
    $region17: #{tpu_custom_call.1} parent=1 // pred_fallthru
      _
    // Predicated region
    $region18: #{tpu_custom_call.1} parent=1 // pred_check
      _
    $region19: #{tpu_custom_call.1} parent=1 // pred_check_branch
      %25 = sbr.rel (0) target = $region21
    $region20: #{tpu_custom_call.1} parent=1 // pred_region
      _
    $region21: #{tpu_custom_call.1} parent=1 // pred_fallthru
      _
    // Predicated region
    $region22: #{tpu_custom_call.1} parent=1 // pred_check
      _
    $region23: #{tpu_custom_call.1} parent=1 // pred_check_branch
      %27 = sbr.rel (0) target = $region25
    $region24: #{tpu_custom_call.1} parent=1 // pred_region
      _
    $region25: #{tpu_custom_call.1} parent=1 // pred_fallthru
      _
    // Predicated region
    $region26: #{tpu_custom_call.1} parent=1 // pred_check
      _
    $region27: #{tpu_custom_call.1} parent=1 // pred_check_branch
      %29 = sbr.rel (0) target = $region29
    $region28: #{tpu_custom_call.1} parent=1 // pred_region
      _
    $region29: #{tpu_custom_call.1} parent=1 // pred_fallthru
      _
    // Predicated region
    $region30: #{tpu_custom_call.1} parent=1 // pred_check
      _
    $region31: #{tpu_custom_call.1} parent=1 // pred_check_branch
      %31 = sbr.rel (0) target = $region33
    $region32: #{tpu_custom_call.1} parent=1 // pred_region
      _
    $region33: #{tpu_custom_call.1} parent=1 // pred_fallthru
      _
    // Predicated region
    $region34: #{tpu_custom_call.1} parent=1 // pred_check
      _
    $region35: #{tpu_custom_call.1} parent=1 // pred_check_branch
      %33 = sbr.rel (0) target = $region37
    $region36: #{tpu_custom_call.1} parent=1 // pred_region
      _
    $region37: #{tpu_custom_call.1} parent=1 // pred_fallthru
      _
    // Predicated region
    $region38: #{tpu_custom_call.1} parent=1 // pred_check
      _
    $region39: #{tpu_custom_call.1} parent=1 // pred_check_branch
      %35 = sbr.rel (0) target = $region41
    $region40: #{tpu_custom_call.1} parent=1 // pred_region
      _
    $region41: #{tpu_custom_call.1} parent=1 // pred_fallthru
      _
    %v36 = vld [vmem:[%s0] sm:$0xff]
    %v37 = vld [vmem:[%s0 + $0x8] sm:$0xff]
    %v38 = vld [vmem:[%s0 + $0x10] sm:$0xff]
    %v39 = vld [vmem:[%s0 + $0x18] sm:$0xff]
    %v40 = vld [vmem:[%s0 + $0x20] sm:$0x3]
    %v41 = vld [vmem:[%s0 + $0x28] sm:$0x3]
    %v42 = vld [vmem:[%s1] sm:$0xff]
    %v43 = vld [vmem:[%s1 + $0x8] sm:$0xff]
    %v44 = vld [vmem:[%s1 + $0x10] sm:$0xff]
    %v45 = vld [vmem:[%s1 + $0x18] sm:$0xff]
    %v46 = vld [vmem:[%s1 + $0x20] sm:$0xff]
    %v47 = vld [vmem:[%s1 + $0x28] sm:$0xff]
    %v48 = vld [vmem:[%s1 + $0x30] sm:$0xff]
    %v49 = vld [vmem:[%s1 + $0x38] sm:$0xff]
    %v50 = vld [vmem:[%s1 + $0x40] sm:$0xff]
    %v51 = vld [vmem:[%s1 + $0x48] sm:$0xff]
    %v52 = vld [vmem:[%s1 + $0x50] sm:$0xff]
    %v53 = vld [vmem:[%s1 + $0x58] sm:$0xff]
    %v54 = vld [vmem:[%s1 + $0x60] sm:$0xff]
    %v55 = vld [vmem:[%s1 + $0x68] sm:$0xff]
    %v56 = vld [vmem:[%s1 + $0x70] sm:$0xff]
    %v57 = vld [vmem:[%s1 + $0x78] sm:$0xff]
    %v58 = vld [vmem:[%s1 + $0x80] sm:$0x3]
    %v59 = vld [vmem:[%s2] sm:$0x1]
    %v61 = vlaneseq
    %v62 = vshrl.u32 %v61, 7
    %v63 = vsub.s32 0, %v62
    %v64 = vrot.slane %v59, %v63
    %vm66 = vcmask 15360
    %v68 = vsel %vm66, %v37, 0
    %v71 = vsel %vm66, %v39, 0
    %v74 = vsel %vm66, %v41, 0
    %vm76 = vcmask 1041408
    %v78 = vsel %vm76, %v58, 0
    %80 = vmatprep.subr.mxu0 0.0
    %81 = vmatpush1.msra.mxu0 %v57
    %82 = vmatprep.subr.mxu0 0.0
    %83 = vmatpush1.msra.mxu0 %v56
    %84 = vmatprep.subr.mxu0 0.0
    %85 = vmatpush1.msra.mxu0 %v55
    %86 = vmatprep.subr.mxu0 0.0
    %87 = vmatpush1.msra.mxu0 %v54
    %88 = vmatprep.subr.mxu0 0.0
    %89 = vmatpush1.msra.mxu0 %v53
    %90 = vmatprep.subr.mxu0 0.0
    %91 = vmatpush1.msra.mxu0 %v52
    %92 = vmatprep.subr.mxu0 0.0
    %93 = vmatpush1.msra.mxu0 %v51
    %94 = vmatprep.subr.mxu0 0.0
    %95 = vmatpush1.msra.mxu0 %v50
    %96 = vmatprep.subr.mxu0 0.0
    %97 = vmatpush1.msra.mxu0 %v49
    %98 = vmatprep.subr.mxu0 0.0
    %99 = vmatpush1.msra.mxu0 %v48
    %100 = vmatprep.subr.mxu0 0.0
    %101 = vmatpush1.msra.mxu0 %v47
    %102 = vmatprep.subr.mxu0 0.0
    %103 = vmatpush1.msra.mxu0 %v46
    %104 = vmatprep.subr.mxu0 0.0
    %105 = vmatpush1.msra.mxu0 %v45
    %106 = vmatprep.subr.mxu0 0.0
    %107 = vmatpush1.msra.mxu0 %v44
    %108 = vmatprep.subr.mxu0 0.0
    %109 = vmatpush1.msra.mxu0 %v43
    %110 = vmatprep.subr.mxu0 0.0
    %111 = vmatpush1.msra.mxu0 %v42
    %112 = vmatprep.subr.mxu0 0.0
    %113 = vmatpush2.msra.mxu0 0.0
    %114 = vmatprep.subr.mxu0 0.0
    %115 = vmatpush2.msra.mxu0 0.0
    %116 = vmatprep.subr.mxu0 0.0
    %117 = vmatpush2.msra.mxu0 0.0
    %118 = vmatprep.subr.mxu0 0.0
    %119 = vmatpush2.msra.mxu0 0.0
    %120 = vmatprep.subr.mxu0 0.0
    %121 = vmatpush2.msra.mxu0 0.0
    %122 = vmatprep.subr.mxu0 0.0
    %123 = vmatpush2.msra.mxu0 0.0
    %124 = vmatprep.subr.mxu0 0.0
    %125 = vmatpush2.msra.mxu0 0.0
    %126 = vmatprep.subr.mxu0 0.0
    %127 = vmatpush2.msra.mxu0 0.0
    %128 = vmatprep.subr.mxu0 0.0
    %129 = vmatpush2.msra.mxu0 0.0
    %130 = vmatprep.subr.mxu0 0.0
    %131 = vmatpush2.msra.mxu0 0.0
    %132 = vmatprep.subr.mxu0 0.0
    %133 = vmatpush2.msra.mxu0 0.0
    %134 = vmatprep.subr.mxu0 0.0
    %135 = vmatpush2.msra.mxu0 0.0
    %136 = vmatprep.subr.mxu0 0.0
    %137 = vmatpush2.msra.mxu0 0.0
    %138 = vmatprep.subr.mxu0 0.0
    %139 = vmatpush2.msra.mxu0 0.0
    %140 = vmatprep.subr.mxu0 0.0
    %141 = vmatpush2.msra.mxu0 0.0
    %142 = vmatprep.subr.mxu0 0.0
    %143 = vmatpush2.msra.mxu0 %v78
    %144 = vmatprep.mubr.f32.mxu0 %v68
    %145 = vmatmul.mubr.f32.gmra.mxu0 %v36
    %v146 = vpop.f32.mrf.mxu0
    %v147 = vadd.f32 %v64, %v146
    %v148 = vpop.f32.mrf.mxu0
    %149 = vmatprep.mubr.f32.mxu0 %v71
    %150 = vmatmul.mubr.f32.gmra.mxu0 %v38
    %v151 = vpop.f32.mrf.mxu0
    %v152 = vadd.f32 %v64, %v151
    %v153 = vpop.f32.mrf.mxu0
    %154 = vmatprep.mubr.f32.mxu0 %v74
    %155 = vmatmul.mubr.f32.gmra.mxu0 %v40
    %v156 = vpop.f32.mrf.mxu0
    %v157 = vadd.f32 %v64, %v156
    %v158 = vpop.f32.mrf.mxu0
    %159 = vdwg.mxu0
    %vm160 = vcmask 146432
    %v162 = vsel %vm160, 1.0, 0
    %v165 = vsel %vm76, %v157, 0
    %167 = vmatprep.subr.mxu0 0.0
    %168 = vmatpush1.msra.mxu0 0.0
    %169 = vmatprep.subr.mxu0 0.0
    %170 = vmatpush1.msra.mxu0 0.0
    %171 = vmatprep.subr.mxu0 0.0
    %172 = vmatpush1.msra.mxu0 0.0
    %173 = vmatprep.subr.mxu0 0.0
    %174 = vmatpush1.msra.mxu0 0.0
    %175 = vmatprep.subr.mxu0 0.0
    %176 = vmatpush1.msra.mxu0 0.0
    %177 = vmatprep.subr.mxu0 0.0
    %178 = vmatpush1.msra.mxu0 0.0
    %179 = vmatprep.subr.mxu0 0.0
    %180 = vmatpush1.msra.mxu0 0.0
    %181 = vmatprep.subr.mxu0 0.0
    %182 = vmatpush1.msra.mxu0 0.0
    %183 = vmatprep.subr.mxu0 0.0
    %184 = vmatpush1.msra.mxu0 0.0
    %185 = vmatprep.subr.mxu0 0.0
    %186 = vmatpush1.msra.mxu0 0.0
    %187 = vmatprep.subr.mxu0 0.0
    %188 = vmatpush1.msra.mxu0 0.0
    %189 = vmatprep.subr.mxu0 0.0
    %190 = vmatpush1.msra.mxu0 0.0
    %191 = vmatprep.subr.mxu0 0.0
    %192 = vmatpush1.msra.mxu0 0.0
    %193 = vmatprep.subr.mxu0 0.0
    %194 = vmatpush1.msra.mxu0 %v165
    %195 = vmatprep.subr.mxu0 0.0
    %196 = vmatpush1.msra.mxu0 %v152
    %197 = vmatprep.subr.mxu0 0.0
    %198 = vmatpush1.msra.mxu0 %v147
    %199 = vmatprep.subr.mxu0 0.0
    %200 = vmatpush2.msra.mxu0 0.0
    %201 = vmatprep.subr.mxu0 0.0
    %202 = vmatpush2.msra.mxu0 0.0
    %203 = vmatprep.subr.mxu0 0.0
    %204 = vmatpush2.msra.mxu0 0.0
    %205 = vmatprep.subr.mxu0 0.0
    %206 = vmatpush2.msra.mxu0 0.0
    %207 = vmatprep.subr.mxu0 0.0
    %208 = vmatpush2.msra.mxu0 0.0
    %209 = vmatprep.subr.mxu0 0.0
    %210 = vmatpush2.msra.mxu0 0.0
    %211 = vmatprep.subr.mxu0 0.0
    %212 = vmatpush2.msra.mxu0 0.0
    %213 = vmatprep.subr.mxu0 0.0
    %214 = vmatpush2.msra.mxu0 0.0
    %215 = vmatprep.subr.mxu0 0.0
    %216 = vmatpush2.msra.mxu0 0.0
    %217 = vmatprep.subr.mxu0 0.0
    %218 = vmatpush2.msra.mxu0 0.0
    %219 = vmatprep.subr.mxu0 0.0
    %220 = vmatpush2.msra.mxu0 0.0
    %221 = vmatprep.subr.mxu0 0.0
    %222 = vmatpush2.msra.mxu0 0.0
    %223 = vmatprep.subr.mxu0 0.0
    %224 = vmatpush2.msra.mxu0 0.0
    %225 = vmatprep.subr.mxu0 0.0
    %226 = vmatpush2.msra.mxu0 0.0
    %227 = vmatprep.subr.mxu0 0.0
    %228 = vmatpush2.msra.mxu0 0.0
    %229 = vmatprep.subr.mxu0 0.0
    %230 = vmatpush2.msra.mxu0 0.0
    %231 = vmatprep.mubr.f32.mxu0 0.0
    %232 = vmatmul.mubr.f32.gmra.mxu0 %v162
    %v233 = vpop.f32.mrf.mxu0
    %v234 = vadd.f32 0.0, %v233
    %v235 = vpop.f32.mrf.mxu0
    %236 = vdwg.mxu0
    %v237 = vmul.f32 %v234, 0.055555556
    %v238 = vlaneseq
    %v239 = vshrl.u32 %v238, 7
    %v240 = vsub.s32 0, %v239
    %v241 = vrot.slane %v237, %v240
    %v242 = vsub.f32 %v147, %v241
    %v243 = vsub.f32 %v152, %v241
    %v244 = vsub.f32 %v157, %v241
    %v245 = vmul.f32 %v242, %v242
    %v246 = vmul.f32 %v243, %v243
    %v247 = vmul.f32 %v244, %v244
    %v249 = vsel %vm76, %v247, 0
    %251 = vmatprep.subr.mxu0 0.0
    %252 = vmatpush1.msra.mxu0 0.0
    %253 = vmatprep.subr.mxu0 0.0
    %254 = vmatpush1.msra.mxu0 0.0
    %255 = vmatprep.subr.mxu0 0.0
    %256 = vmatpush1.msra.mxu0 0.0
    %257 = vmatprep.subr.mxu0 0.0
    %258 = vmatpush1.msra.mxu0 0.0
    %259 = vmatprep.subr.mxu0 0.0
    %260 = vmatpush1.msra.mxu0 0.0
    %261 = vmatprep.subr.mxu0 0.0
    %262 = vmatpush1.msra.mxu0 0.0
    %263 = vmatprep.subr.mxu0 0.0
    %264 = vmatpush1.msra.mxu0 0.0
    %265 = vmatprep.subr.mxu0 0.0
    %266 = vmatpush1.msra.mxu0 0.0
    %267 = vmatprep.subr.mxu0 0.0
    %268 = vmatpush1.msra.mxu0 0.0
    %269 = vmatprep.subr.mxu0 0.0
    %270 = vmatpush1.msra.mxu0 0.0
    %271 = vmatprep.subr.mxu0 0.0
    %272 = vmatpush1.msra.mxu0 0.0
    %273 = vmatprep.subr.mxu0 0.0
    %274 = vmatpush1.msra.mxu0 0.0
    %275 = vmatprep.subr.mxu0 0.0
    %276 = vmatpush1.msra.mxu0 0.0
    %277 = vmatprep.subr.mxu0 0.0
    %278 = vmatpush1.msra.mxu0 %v249
    %279 = vmatprep.subr.mxu0 0.0
    %280 = vmatpush1.msra.mxu0 %v246
    %281 = vmatprep.subr.mxu0 0.0
    %282 = vmatpush1.msra.mxu0 %v245
    %283 = vmatprep.subr.mxu0 0.0
    %284 = vmatpush2.msra.mxu0 0.0
    %285 = vmatprep.subr.mxu0 0.0
    %286 = vmatpush2.msra.mxu0 0.0
    %287 = vmatprep.subr.mxu0 0.0
    %288 = vmatpush2.msra.mxu0 0.0
    %289 = vmatprep.subr.mxu0 0.0
    %290 = vmatpush2.msra.mxu0 0.0
    %291 = vmatprep.subr.mxu0 0.0
    %292 = vmatpush2.msra.mxu0 0.0
    %293 = vmatprep.subr.mxu0 0.0
    %294 = vmatpush2.msra.mxu0 0.0
    %295 = vmatprep.subr.mxu0 0.0
    %296 = vmatpush2.msra.mxu0 0.0
    %297 = vmatprep.subr.mxu0 0.0
    %298 = vmatpush2.msra.mxu0 0.0
    %299 = vmatprep.subr.mxu0 0.0
    %300 = vmatpush2.msra.mxu0 0.0
    %301 = vmatprep.subr.mxu0 0.0
    %302 = vmatpush2.msra.mxu0 0.0
    %303 = vmatprep.subr.mxu0 0.0
    %304 = vmatpush2.msra.mxu0 0.0
    %305 = vmatprep.subr.mxu0 0.0
    %306 = vmatpush2.msra.mxu0 0.0
    %307 = vmatprep.subr.mxu0 0.0
    %308 = vmatpush2.msra.mxu0 0.0
    %309 = vmatprep.subr.mxu0 0.0
    %310 = vmatpush2.msra.mxu0 0.0
    %311 = vmatprep.subr.mxu0 0.0
    %312 = vmatpush2.msra.mxu0 0.0
    %313 = vmatprep.subr.mxu0 0.0
    %314 = vmatpush2.msra.mxu0 0.0
    %315 = vmatprep.mubr.f32.mxu0 0.0
    %316 = vmatmul.mubr.f32.gmra.mxu0 %v162
    %v317 = vpop.f32.mrf.mxu0
    %v318 = vadd.f32 0.0, %v317
    %v319 = vpop.f32.mrf.mxu0
    %320 = vdwg.mxu0
    %v321 = vmul.f32 %v318, 0.05882353
    %v322 = vrsqrt.pop %v321
    %v323 = vmul.f32 %v321, %v322
    %vm324 = vcmp.eq.f32.partialorder %v321, inf
    %v325 = vsel %vm324, %v321, %v323
    %vm326 = vcmp.eq.f32.partialorder %v321, 0.0
    %v327 = vand.u32 %v321, 2147483648
    %v328 = vsel %vm326, %v327, %v325
    %v329 = vadd.f32 %v328, 1e-11
    %v330 = vlaneseq
    %v331 = vshrl.u32 %v330, 7
    %v332 = vsub.s32 0, %v331
    %v333 = vrot.slane %v329, %v332
    %v334 = vrcp.pop %v333
    %v335 = vmul.f32 %v242, %v334
    %v336 = vmul.f32 %v243, %v334
    %v337 = vmul.f32 %v244, %v334
    %v338 = vld [vmem:[%s3] sm:$0x1]
    %v340 = vlaneseq
    %v341 = vshrl.u32 %v340, 7
    %v342 = vsub.s32 0, %v341
    %v343 = vrot.slane %v338, %v342
    %v345 = vmul.f32 %v343, %v335
    %v346 = vmul.f32 %v343, %v336
    %v347 = vmul.f32 %v343, %v337
    %v348 = vld [vmem:[%s4] sm:$0x1]
    %v350 = vlaneseq
    %v351 = vshrl.u32 %v350, 7
    %v352 = vsub.s32 0, %v351
    %v353 = vrot.slane %v348, %v352
    %v355 = vadd.f32 %v345, %v353
    %v356 = vadd.f32 %v346, %v353
    %v357 = vadd.f32 %v347, %v353
    %v358 = vld [vmem:[%s5] sm:$0xff]
    %v359 = vld [vmem:[%s5 + $0x8] sm:$0xff]
    %v360 = vld [vmem:[%s5 + $0x10] sm:$0xff]
    %v361 = vld [vmem:[%s5 + $0x18] sm:$0xff]
    %v362 = vld [vmem:[%s5 + $0x20] sm:$0xff]
    %v363 = vld [vmem:[%s5 + $0x28] sm:$0xff]
    %v364 = vld [vmem:[%s5 + $0x30] sm:$0xff]
    %v365 = vld [vmem:[%s5 + $0x38] sm:$0xff]
    %vm366 = vcmask 523264
    %v368 = vsel %vm366, %v355, 0
    %v371 = vsel %vm366, %v356, 0
    %v374 = vsel %vm366, %v357, 0
    %376 = vmatprep.subr.mxu0 0.0
    %377 = vmatpush1.msra.mxu0 0.0
    %378 = vmatprep.subr.mxu0 0.0
    %379 = vmatpush1.msra.mxu0 0.0
    %380 = vmatprep.subr.mxu0 0.0
    %381 = vmatpush1.msra.mxu0 0.0
    %382 = vmatprep.subr.mxu0 0.0
    %383 = vmatpush1.msra.mxu0 0.0
    %384 = vmatprep.subr.mxu0 0.0
    %385 = vmatpush1.msra.mxu0 0.0
    %386 = vmatprep.subr.mxu0 0.0
    %387 = vmatpush1.msra.mxu0 0.0
    %388 = vmatprep.subr.mxu0 0.0
    %389 = vmatpush1.msra.mxu0 0.0
    %390 = vmatprep.subr.mxu0 0.0
    %391 = vmatpush1.msra.mxu0 0.0
    %392 = vmatprep.subr.mxu0 0.0
    %393 = vmatpush1.msra.mxu0 %v365
    %394 = vmatprep.subr.mxu0 0.0
    %395 = vmatpush1.msra.mxu0 %v364
    %396 = vmatprep.subr.mxu0 0.0
    %397 = vmatpush1.msra.mxu0 %v363
    %398 = vmatprep.subr.mxu0 0.0
    %399 = vmatpush1.msra.mxu0 %v362
    %400 = vmatprep.subr.mxu0 0.0
    %401 = vmatpush1.msra.mxu0 %v361
    %402 = vmatprep.subr.mxu0 0.0
    %403 = vmatpush1.msra.mxu0 %v360
    %404 = vmatprep.subr.mxu0 0.0
    %405 = vmatpush1.msra.mxu0 %v359
    %406 = vmatprep.subr.mxu0 0.0
    %407 = vmatpush1.msra.mxu0 %v358
    %408 = vmatprep.subr.mxu0 0.0
    %409 = vmatpush2.msra.mxu0 0.0
    %410 = vmatprep.subr.mxu0 0.0
    %411 = vmatpush2.msra.mxu0 0.0
    %412 = vmatprep.subr.mxu0 0.0
    %413 = vmatpush2.msra.mxu0 0.0
    %414 = vmatprep.subr.mxu0 0.0
    %415 = vmatpush2.msra.mxu0 0.0
    %416 = vmatprep.subr.mxu0 0.0
    %417 = vmatpush2.msra.mxu0 0.0
    %418 = vmatprep.subr.mxu0 0.0
    %419 = vmatpush2.msra.mxu0 0.0
    %420 = vmatprep.subr.mxu0 0.0
    %421 = vmatpush2.msra.mxu0 0.0
    %422 = vmatprep.subr.mxu0 0.0
    %423 = vmatpush2.msra.mxu0 0.0
    %424 = vmatprep.subr.mxu0 0.0
    %425 = vmatpush2.msra.mxu0 0.0
    %426 = vmatprep.subr.mxu0 0.0
    %427 = vmatpush2.msra.mxu0 0.0
    %428 = vmatprep.subr.mxu0 0.0
    %429 = vmatpush2.msra.mxu0 0.0
    %430 = vmatprep.subr.mxu0 0.0
    %431 = vmatpush2.msra.mxu0 0.0
    %432 = vmatprep.subr.mxu0 0.0
    %433 = vmatpush2.msra.mxu0 0.0
    %434 = vmatprep.subr.mxu0 0.0
    %435 = vmatpush2.msra.mxu0 0.0
    %436 = vmatprep.subr.mxu0 0.0
    %437 = vmatpush2.msra.mxu0 0.0
    %438 = vmatprep.subr.mxu0 0.0
    %439 = vmatpush2.msra.mxu0 0.0
    %440 = vmatprep.mubr.f32.mxu0 0.0
    %441 = vmatmul.mubr.f32.gmra.mxu0 %v368
    %v442 = vpop.f32.mrf.mxu0
    %v443 = vadd.f32 0.0, %v442
    %v444 = vpop.f32.mrf.mxu0
    %445 = vmatprep.mubr.f32.mxu0 0.0
    %446 = vmatmul.mubr.f32.gmra.mxu0 %v371
    %v447 = vpop.f32.mrf.mxu0
    %v448 = vadd.f32 0.0, %v447
    %v449 = vpop.f32.mrf.mxu0
    %450 = vmatprep.mubr.f32.mxu0 0.0
    %451 = vmatmul.mubr.f32.gmra.mxu0 %v374
    %v452 = vpop.f32.mrf.mxu0
    %v453 = vadd.f32 0.0, %v452
    %v454 = vpop.f32.mrf.mxu0
    %455 = vdwg.mxu0
    %v456 = vtanh.pop %v443
    %v457 = vtanh.pop %v448
    %v458 = vtanh.pop %v453
    %v459 = vld [vmem:[%s6] sm:$0xff]
    %v460 = vld [vmem:[%s6 + $0x8] sm:$0xff]
    %v461 = vld [vmem:[%s6 + $0x10] sm:$0xff]
    %v462 = vld [vmem:[%s6 + $0x18] sm:$0xff]
    %v463 = vld [vmem:[%s6 + $0x20] sm:$0xff]
    %v464 = vld [vmem:[%s6 + $0x28] sm:$0xff]
    %v465 = vld [vmem:[%s6 + $0x30] sm:$0xff]
    %v466 = vld [vmem:[%s6 + $0x38] sm:$0xff]
    %v468 = vsel %vm366, %v456, 0
    %v471 = vsel %vm366, %v457, 0
    %v474 = vsel %vm366, %v458, 0
    %476 = vmatprep.subr.mxu0 0.0
    %477 = vmatpush1.msra.mxu0 0.0
    %478 = vmatprep.subr.mxu0 0.0
    %479 = vmatpush1.msra.mxu0 0.0
    %480 = vmatprep.subr.mxu0 0.0
    %481 = vmatpush1.msra.mxu0 0.0
    %482 = vmatprep.subr.mxu0 0.0
    %483 = vmatpush1.msra.mxu0 0.0
    %484 = vmatprep.subr.mxu0 0.0
    %485 = vmatpush1.msra.mxu0 0.0
    %486 = vmatprep.subr.mxu0 0.0
    %487 = vmatpush1.msra.mxu0 0.0
    %488 = vmatprep.subr.mxu0 0.0
    %489 = vmatpush1.msra.mxu0 0.0
    %490 = vmatprep.subr.mxu0 0.0
    %491 = vmatpush1.msra.mxu0 0.0
    %492 = vmatprep.subr.mxu0 0.0
    %493 = vmatpush1.msra.mxu0 %v466
    %494 = vmatprep.subr.mxu0 0.0
    %495 = vmatpush1.msra.mxu0 %v465
    %496 = vmatprep.subr.mxu0 0.0
    %497 = vmatpush1.msra.mxu0 %v464
    %498 = vmatprep.subr.mxu0 0.0
    %499 = vmatpush1.msra.mxu0 %v463
    %500 = vmatprep.subr.mxu0 0.0
    %501 = vmatpush1.msra.mxu0 %v462
    %502 = vmatprep.subr.mxu0 0.0
    %503 = vmatpush1.msra.mxu0 %v461
    %504 = vmatprep.subr.mxu0 0.0
    %505 = vmatpush1.msra.mxu0 %v460
    %506 = vmatprep.subr.mxu0 0.0
    %507 = vmatpush1.msra.mxu0 %v459
    %508 = vmatprep.subr.mxu0 0.0
    %509 = vmatpush2.msra.mxu0 0.0
    %510 = vmatprep.subr.mxu0 0.0
    %511 = vmatpush2.msra.mxu0 0.0
    %512 = vmatprep.subr.mxu0 0.0
    %513 = vmatpush2.msra.mxu0 0.0
    %514 = vmatprep.subr.mxu0 0.0
    %515 = vmatpush2.msra.mxu0 0.0
    %516 = vmatprep.subr.mxu0 0.0
    %517 = vmatpush2.msra.mxu0 0.0
    %518 = vmatprep.subr.mxu0 0.0
    %519 = vmatpush2.msra.mxu0 0.0
    %520 = vmatprep.subr.mxu0 0.0
    %521 = vmatpush2.msra.mxu0 0.0
    %522 = vmatprep.subr.mxu0 0.0
    %523 = vmatpush2.msra.mxu0 0.0
    %524 = vmatprep.subr.mxu0 0.0
    %525 = vmatpush2.msra.mxu0 0.0
    %526 = vmatprep.subr.mxu0 0.0
    %527 = vmatpush2.msra.mxu0 0.0
    %528 = vmatprep.subr.mxu0 0.0
    %529 = vmatpush2.msra.mxu0 0.0
    %530 = vmatprep.subr.mxu0 0.0
    %531 = vmatpush2.msra.mxu0 0.0
    %532 = vmatprep.subr.mxu0 0.0
    %533 = vmatpush2.msra.mxu0 0.0
    %534 = vmatprep.subr.mxu0 0.0
    %535 = vmatpush2.msra.mxu0 0.0
    %536 = vmatprep.subr.mxu0 0.0
    %537 = vmatpush2.msra.mxu0 0.0
    %538 = vmatprep.subr.mxu0 0.0
    %539 = vmatpush2.msra.mxu0 0.0
    %540 = vmatprep.mubr.f32.mxu0 0.0
    %541 = vmatmul.mubr.f32.gmra.mxu0 %v468
    %v542 = vpop.f32.mrf.mxu0
    %v543 = vadd.f32 0.0, %v542
    %v544 = vpop.f32.mrf.mxu0
    %545 = vmatprep.mubr.f32.mxu0 0.0
    %546 = vmatmul.mubr.f32.gmra.mxu0 %v471
    %v547 = vpop.f32.mrf.mxu0
    %v548 = vadd.f32 0.0, %v547
    %v549 = vpop.f32.mrf.mxu0
    %550 = vmatprep.mubr.f32.mxu0 0.0
    %551 = vmatmul.mubr.f32.gmra.mxu0 %v474
    %v552 = vpop.f32.mrf.mxu0
    %v553 = vadd.f32 0.0, %v552
    %v554 = vpop.f32.mrf.mxu0
    %555 = vdwg.mxu0
    %v556 = vsel %vm66, %v543, -inf
    %v557 = vsel %vm66, %v548, -inf
    %vm558 = vcmask 9216
    %v559 = vsel %vm558, %v553, -inf
    %v560 = vmax.f32 %v556, %v557
    %v561 = vmax.f32 %v560, %v559
    %v562 = vrot.slane %v561, 4
    %v563 = vmax.f32 %v561, %v562
    %v564 = vrot.slane %v563, 2
    %v565 = vmax.f32 %v563, %v564
    %v566 = vrot.slane %v565, 1
    %v567 = vmax.f32 %v565, %v566
    %v568 = vsub.f32 %v543, %v567
    %v569 = vsub.f32 %v548, %v567
    %v570 = vsub.f32 %v553, %v567
    %v571 = vmul.f32 %v568, 1.442695
    %v572 = vpow.pop %v571
    %v573 = vmul.f32 %v569, 1.442695
    %v574 = vpow.pop %v573
    %v575 = vmul.f32 %v570, 1.442695
    %v576 = vpow.pop %v575
    %v578 = vsel %vm76, %v576, 0
    %580 = vmatprep.subr.mxu0 0.0
    %581 = vmatpush1.msra.mxu0 0.0
    %582 = vmatprep.subr.mxu0 0.0
    %583 = vmatpush1.msra.mxu0 0.0
    %584 = vmatprep.subr.mxu0 0.0
    %585 = vmatpush1.msra.mxu0 0.0
    %586 = vmatprep.subr.mxu0 0.0
    %587 = vmatpush1.msra.mxu0 0.0
    %588 = vmatprep.subr.mxu0 0.0
    %589 = vmatpush1.msra.mxu0 0.0
    %590 = vmatprep.subr.mxu0 0.0
    %591 = vmatpush1.msra.mxu0 0.0
    %592 = vmatprep.subr.mxu0 0.0
    %593 = vmatpush1.msra.mxu0 0.0
    %594 = vmatprep.subr.mxu0 0.0
    %595 = vmatpush1.msra.mxu0 0.0
    %596 = vmatprep.subr.mxu0 0.0
    %597 = vmatpush1.msra.mxu0 0.0
    %598 = vmatprep.subr.mxu0 0.0
    %599 = vmatpush1.msra.mxu0 0.0
    %600 = vmatprep.subr.mxu0 0.0
    %601 = vmatpush1.msra.mxu0 0.0
    %602 = vmatprep.subr.mxu0 0.0
    %603 = vmatpush1.msra.mxu0 0.0
    %604 = vmatprep.subr.mxu0 0.0
    %605 = vmatpush1.msra.mxu0 0.0
    %606 = vmatprep.subr.mxu0 0.0
    %607 = vmatpush1.msra.mxu0 %v578
    %608 = vmatprep.subr.mxu0 0.0
    %609 = vmatpush1.msra.mxu0 %v574
    %610 = vmatprep.subr.mxu0 0.0
    %611 = vmatpush1.msra.mxu0 %v572
    %612 = vmatprep.subr.mxu0 0.0
    %613 = vmatpush2.msra.mxu0 0.0
    %614 = vmatprep.subr.mxu0 0.0
    %615 = vmatpush2.msra.mxu0 0.0
    %616 = vmatprep.subr.mxu0 0.0
    %617 = vmatpush2.msra.mxu0 0.0
    %618 = vmatprep.subr.mxu0 0.0
    %619 = vmatpush2.msra.mxu0 0.0
    %620 = vmatprep.subr.mxu0 0.0
    %621 = vmatpush2.msra.mxu0 0.0
    %622 = vmatprep.subr.mxu0 0.0
    %623 = vmatpush2.msra.mxu0 0.0
    %624 = vmatprep.subr.mxu0 0.0
    %625 = vmatpush2.msra.mxu0 0.0
    %626 = vmatprep.subr.mxu0 0.0
    %627 = vmatpush2.msra.mxu0 0.0
    %628 = vmatprep.subr.mxu0 0.0
    %629 = vmatpush2.msra.mxu0 0.0
    %630 = vmatprep.subr.mxu0 0.0
    %631 = vmatpush2.msra.mxu0 0.0
    %632 = vmatprep.subr.mxu0 0.0
    %633 = vmatpush2.msra.mxu0 0.0
    %634 = vmatprep.subr.mxu0 0.0
    %635 = vmatpush2.msra.mxu0 0.0
    %636 = vmatprep.subr.mxu0 0.0
    %637 = vmatpush2.msra.mxu0 0.0
    %638 = vmatprep.subr.mxu0 0.0
    %639 = vmatpush2.msra.mxu0 0.0
    %640 = vmatprep.subr.mxu0 0.0
    %641 = vmatpush2.msra.mxu0 0.0
    %642 = vmatprep.subr.mxu0 0.0
    %643 = vmatpush2.msra.mxu0 0.0
    %644 = vmatprep.mubr.f32.mxu0 0.0
    %645 = vmatmul.mubr.f32.gmra.mxu0 %v162
    %v646 = vpop.f32.mrf.mxu0
    %v647 = vadd.f32 0.0, %v646
    %v648 = vpop.f32.mrf.mxu0
    %649 = vdwg.mxu0
    %v650 = vrcp.pop %v647
    %v651 = vlaneseq
    %v652 = vshrl.u32 %v651, 7
    %v653 = vsub.s32 0, %v652
    %v654 = vrot.slane %v650, %v653
    %v655 = vmul.f32 %v572, %v654
    %v656 = vmul.f32 %v574, %v654
    %v657 = vmul.f32 %v576, %v654
    %658 = vxpose.xlu0.b32.start [1/16] %v655, 128
    %659 = vxpose.xlu0.b32.cont [2/16] %v656, 128
    %660 = vxpose.xlu0.b32.cont [3/16] %v657, 128
    %661 = vxpose.xlu0.b32.cont [4/16] 0.0, 128
    %662 = vxpose.xlu0.b32.cont [5/16] 0.0, 128
    %663 = vxpose.xlu0.b32.cont [6/16] 0.0, 128
    %664 = vxpose.xlu0.b32.cont [7/16] 0.0, 128
    %665 = vxpose.xlu0.b32.cont [8/16] 0.0, 128
    %666 = vxpose.xlu0.b32.cont [9/16] 0.0, 128
    %667 = vxpose.xlu0.b32.cont [10/16] 0.0, 128
    %668 = vxpose.xlu0.b32.cont [11/16] 0.0, 128
    %669 = vxpose.xlu0.b32.cont [12/16] 0.0, 128
    %670 = vxpose.xlu0.b32.cont [13/16] 0.0, 128
    %671 = vxpose.xlu0.b32.cont [14/16] 0.0, 128
    %672 = vxpose.xlu0.b32.cont [15/16] 0.0, 128
    %673 = vxpose.xlu0.b32.end [16/16] 0.0, 128
    %v674 = vpop.trf.xlu0
    %v675 = vpop.trf.xlu0
    %v676 = vpop.trf.xlu0
    %v677 = vpop.trf.xlu0
    %v678 = vpop.trf.xlu0
    %v679 = vpop.trf.xlu0
    %v680 = vpop.trf.xlu0
    %v681 = vpop.trf.xlu0
    %v682 = vpop.trf.xlu0
    %v683 = vpop.trf.xlu0
    %v684 = vpop.trf.xlu0
    %v685 = vpop.trf.xlu0
    %v686 = vpop.trf.xlu0
    %v687 = vpop.trf.xlu0
    %v688 = vpop.trf.xlu0
    %v689 = vpop.trf.xlu0
    %v691 = vsel %vm160, %v674, 0
    %v693 = vsel %vm76, %v357, 0
    %695 = vmatprep.subr.mxu0 0.0
    %696 = vmatpush1.msra.mxu0 0.0
    %697 = vmatprep.subr.mxu0 0.0
    %698 = vmatpush1.msra.mxu0 0.0
    %699 = vmatprep.subr.mxu0 0.0
    %700 = vmatpush1.msra.mxu0 0.0
    %701 = vmatprep.subr.mxu0 0.0
    %702 = vmatpush1.msra.mxu0 0.0
    %703 = vmatprep.subr.mxu0 0.0
    %704 = vmatpush1.msra.mxu0 0.0
    %705 = vmatprep.subr.mxu0 0.0
    %706 = vmatpush1.msra.mxu0 0.0
    %707 = vmatprep.subr.mxu0 0.0
    %708 = vmatpush1.msra.mxu0 0.0
    %709 = vmatprep.subr.mxu0 0.0
    %710 = vmatpush1.msra.mxu0 0.0
    %711 = vmatprep.subr.mxu0 0.0
    %712 = vmatpush1.msra.mxu0 0.0
    %713 = vmatprep.subr.mxu0 0.0
    %714 = vmatpush1.msra.mxu0 0.0
    %715 = vmatprep.subr.mxu0 0.0
    %716 = vmatpush1.msra.mxu0 0.0
    %717 = vmatprep.subr.mxu0 0.0
    %718 = vmatpush1.msra.mxu0 0.0
    %719 = vmatprep.subr.mxu0 0.0
    %720 = vmatpush1.msra.mxu0 0.0
    %721 = vmatprep.subr.mxu0 0.0
    %722 = vmatpush1.msra.mxu0 %v693
    %723 = vmatprep.subr.mxu0 0.0
    %724 = vmatpush1.msra.mxu0 %v356
    %725 = vmatprep.subr.mxu0 0.0
    %726 = vmatpush1.msra.mxu0 %v355
    %727 = vmatprep.subr.mxu0 0.0
    %728 = vmatpush2.msra.mxu0 0.0
    %729 = vmatprep.subr.mxu0 0.0
    %730 = vmatpush2.msra.mxu0 0.0
    %731 = vmatprep.subr.mxu0 0.0
    %732 = vmatpush2.msra.mxu0 0.0
    %733 = vmatprep.subr.mxu0 0.0
    %734 = vmatpush2.msra.mxu0 0.0
    %735 = vmatprep.subr.mxu0 0.0
    %736 = vmatpush2.msra.mxu0 0.0
    %737 = vmatprep.subr.mxu0 0.0
    %738 = vmatpush2.msra.mxu0 0.0
    %739 = vmatprep.subr.mxu0 0.0
    %740 = vmatpush2.msra.mxu0 0.0
    %741 = vmatprep.subr.mxu0 0.0
    %742 = vmatpush2.msra.mxu0 0.0
    %743 = vmatprep.subr.mxu0 0.0
    %744 = vmatpush2.msra.mxu0 0.0
    %745 = vmatprep.subr.mxu0 0.0
    %746 = vmatpush2.msra.mxu0 0.0
    %747 = vmatprep.subr.mxu0 0.0
    %748 = vmatpush2.msra.mxu0 0.0
    %749 = vmatprep.subr.mxu0 0.0
    %750 = vmatpush2.msra.mxu0 0.0
    %751 = vmatprep.subr.mxu0 0.0
    %752 = vmatpush2.msra.mxu0 0.0
    %753 = vmatprep.subr.mxu0 0.0
    %754 = vmatpush2.msra.mxu0 0.0
    %755 = vmatprep.subr.mxu0 0.0
    %756 = vmatpush2.msra.mxu0 0.0
    %757 = vmatprep.subr.mxu0 0.0
    %758 = vmatpush2.msra.mxu0 0.0
    %759 = vmatprep.mubr.f32.mxu0 0.0
    %760 = vmatmul.mubr.f32.gmra.mxu0 %v691
    %v761 = vpop.f32.mrf.mxu0
    %v762 = vadd.f32 0.0, %v761
    %v763 = vpop.f32.mrf.mxu0
    %764 = vdwg.mxu0
    %v765 = vld [vmem:[%s7] sm:$0x3]
    %v766 = vmul.f32 %v762, %v765
    %v767 = vld [vmem:[%s8] sm:$0xff]
    %v768 = vld [vmem:[%s8 + $0x8] sm:$0xff]
    %v769 = vld [vmem:[%s8 + $0x10] sm:$0xff]
    %v770 = vld [vmem:[%s8 + $0x18] sm:$0xff]
    %v771 = vld [vmem:[%s8 + $0x20] sm:$0xff]
    %v772 = vld [vmem:[%s8 + $0x28] sm:$0xff]
    %v773 = vld [vmem:[%s8 + $0x30] sm:$0xff]
    %v774 = vld [vmem:[%s8 + $0x38] sm:$0xff]
    %v775 = vld [vmem:[%s9] sm:$0x1]
    %v777 = vlaneseq
    %v778 = vshrl.u32 %v777, 7
    %v779 = vsub.s32 0, %v778
    %v780 = vrot.slane %v775, %v779
    %v783 = vsel %vm366, %v766, 0
    %785 = vmatprep.subr.mxu0 0.0
    %786 = vmatpush1.msra.mxu0 0.0
    %787 = vmatprep.subr.mxu0 0.0
    %788 = vmatpush1.msra.mxu0 0.0
    %789 = vmatprep.subr.mxu0 0.0
    %790 = vmatpush1.msra.mxu0 0.0
    %791 = vmatprep.subr.mxu0 0.0
    %792 = vmatpush1.msra.mxu0 0.0
    %793 = vmatprep.subr.mxu0 0.0
    %794 = vmatpush1.msra.mxu0 0.0
    %795 = vmatprep.subr.mxu0 0.0
    %796 = vmatpush1.msra.mxu0 0.0
    %797 = vmatprep.subr.mxu0 0.0
    %798 = vmatpush1.msra.mxu0 0.0
    %799 = vmatprep.subr.mxu0 0.0
    %800 = vmatpush1.msra.mxu0 0.0
    %801 = vmatprep.subr.mxu0 0.0
    %802 = vmatpush1.msra.mxu0 %v774
    %803 = vmatprep.subr.mxu0 0.0
    %804 = vmatpush1.msra.mxu0 %v773
    %805 = vmatprep.subr.mxu0 0.0
    %806 = vmatpush1.msra.mxu0 %v772
    %807 = vmatprep.subr.mxu0 0.0
    %808 = vmatpush1.msra.mxu0 %v771
    %809 = vmatprep.subr.mxu0 0.0
    %810 = vmatpush1.msra.mxu0 %v770
    %811 = vmatprep.subr.mxu0 0.0
    %812 = vmatpush1.msra.mxu0 %v769
    %813 = vmatprep.subr.mxu0 0.0
    %814 = vmatpush1.msra.mxu0 %v768
    %815 = vmatprep.subr.mxu0 0.0
    %816 = vmatpush1.msra.mxu0 %v767
    %817 = vmatprep.subr.mxu0 0.0
    %818 = vmatpush2.msra.mxu0 0.0
    %819 = vmatprep.subr.mxu0 0.0
    %820 = vmatpush2.msra.mxu0 0.0
    %821 = vmatprep.subr.mxu0 0.0
    %822 = vmatpush2.msra.mxu0 0.0
    %823 = vmatprep.subr.mxu0 0.0
    %824 = vmatpush2.msra.mxu0 0.0
    %825 = vmatprep.subr.mxu0 0.0
    %826 = vmatpush2.msra.mxu0 0.0
    %827 = vmatprep.subr.mxu0 0.0
    %828 = vmatpush2.msra.mxu0 0.0
    %829 = vmatprep.subr.mxu0 0.0
    %830 = vmatpush2.msra.mxu0 0.0
    %831 = vmatprep.subr.mxu0 0.0
    %832 = vmatpush2.msra.mxu0 0.0
    %833 = vmatprep.subr.mxu0 0.0
    %834 = vmatpush2.msra.mxu0 0.0
    %835 = vmatprep.subr.mxu0 0.0
    %836 = vmatpush2.msra.mxu0 0.0
    %837 = vmatprep.subr.mxu0 0.0
    %838 = vmatpush2.msra.mxu0 0.0
    %839 = vmatprep.subr.mxu0 0.0
    %840 = vmatpush2.msra.mxu0 0.0
    %841 = vmatprep.subr.mxu0 0.0
    %842 = vmatpush2.msra.mxu0 0.0
    %843 = vmatprep.subr.mxu0 0.0
    %844 = vmatpush2.msra.mxu0 0.0
    %845 = vmatprep.subr.mxu0 0.0
    %846 = vmatpush2.msra.mxu0 0.0
    %847 = vmatprep.subr.mxu0 0.0
    %848 = vmatpush2.msra.mxu0 0.0
    %849 = vmatprep.mubr.f32.mxu0 0.0
    %850 = vmatmul.mubr.f32.gmra.mxu0 %v783
    %v851 = vpop.f32.mrf.mxu0
    %v852 = vadd.f32 %v780, %v851
    %v853 = vpop.f32.mrf.mxu0
    %854 = vdwg.mxu0
    %v855 = vsel %vm76, %v852, -inf
    %856 = vmax.xlane.f32.xlu0 %v855
    %v857 = vpop.xlane.xlu0 %856
    %v858 = vsub.f32 %v852, %v857
    %v859 = vmul.f32 %v858, 1.442695
    %v860 = vpow.pop %v859
    %v861 = vsel %vm76, %v860, 0.0
    %862 = vadd.xlane.f32.xlu0 %v861
    %v863 = vpop.xlane.xlu0 %862
    %v864 = vrcp.pop %v863
    %v865 = vmul.f32 %v860, %v864
    %866 = vst [vmem:[#allocation2] sm:$0x3] %v865
    // Predicated region
    $region42: #{tpu_custom_call.1} parent=1 // pred_check
      _
    $region43: #{tpu_custom_call.1} parent=1 // pred_check_branch
      %868 = sbr.rel (0) target = $region45
    $region44: #{tpu_custom_call.1} parent=1 // pred_region
      %s870 = ssub.s32 32, 32
      %871 = vsyncadd [#allocation3], %s870
      %s873 = sshll.u32 [#allocation2], 4
      %s874 = int_to_ptr.vmem [resolvable:$true] %s873
      %876 = dma.vmem_to_hbm [thread:$0]  %s874, 32, %s10, [#allocation3]
    $region45: #{tpu_custom_call.1} parent=1 // pred_fallthru
      _
    // Predicated region
    $region46: #{tpu_custom_call.1} parent=1 // pred_check
      _
    $region47: #{tpu_custom_call.1} parent=1 // pred_check_branch
      %878 = sbr.rel (0) target = $region49
    $region48: #{tpu_custom_call.1} parent=1 // pred_region
      %879 = dma.done [#allocation3], 32
    $region49: #{tpu_custom_call.1} parent=1 // pred_fallthru
      _
    %880 = vsyncpa [#allocation3], 1

</llo_original>
